<compile_context>
chip_gen: v6e
topology: v6e:2x2x1
jax: 0.10.0
libtpu: 0.0.40
codegen_flags: <defaults>
</compile_context>

<pallas_src>
import functools

import jax
import jax.numpy as jnp
from jax import lax
from jax.experimental import pallas as pl
from jax.experimental.pallas import tpu as pltpu

EPS = 1e-5
LANES = 128
VMEM_LIMIT = 32 * 1024 * 1024        # <= half of v7x physical VMEM, fine on v5e/v6e


def _round_up(n, m=LANES):
    return ((n + m - 1) // m) * m


def _pick_spatial_tile(hw, target=512):
    """Largest multiple-of-8 divisor of hw that is <= target (else hw itself)."""
    if hw <= target:
        return hw
    t = (target // 8) * 8
    while t >= 8:
        if hw % t == 0:
            return t
        t -= 8
    return hw


# ----------------------------- wrapper-side helpers -----------------------------
def _bn_affine(stats, gamma, beta, inv_count):
    """Reduce (..., 2, C) per-tile (sum, sumsq) partials -> (1, C) scale / shift."""
    red = tuple(range(stats.ndim - 2))
    s = jnp.sum(stats[..., 0, :], axis=red)
    ss = jnp.sum(stats[..., 1, :], axis=red)
    mean = s * inv_count
    var = jnp.maximum(ss * inv_count - mean * mean, 0.0)
    scale = gamma.reshape(-1) * lax.rsqrt(var + EPS)
    shift = beta.reshape(-1) - mean * scale
    return (scale.reshape(1, -1).astype(jnp.float32),
            shift.reshape(1, -1).astype(jnp.float32))


# ------------------------------ pass 1 kernel ----------------------------------
def _conv1_kernel(x_ref, w1_ref, h1_ref, st_ref):
    """1x1 conv as GEMM (bf16 operands, f32 acc) + BN1 (sum, sumsq) partials."""
    x = x_ref[0].astype(jnp.bfloat16)                          # (thw, Cin_p)
    h = jnp.dot(x, w1_ref[...], preferred_element_type=jnp.float32)
    h1_ref[0] = h.astype(jnp.bfloat16)
    s = jnp.sum(h, axis=0, keepdims=True)
    ss = jnp.sum(h * h, axis=0, keepdims=True)
    st_ref[0, 0] = jnp.concatenate([s, ss], axis=0)            # (2, Pp)


# ------------------------------ pass 2 kernel ----------------------------------
def _bn1_conv2_kernel(h1_ref, sc_ref, sh_ref, w2_ref, h2_ref, st_ref,
                      astk_ref, *, h, w):
    """BN1+ReLU, 3x3 conv2 as 3 MXU matmuls of K=3*pp on a kw-stacked padded
    per-image VMEM tile, plus BN2 (sum, sumsq) partials."""
    hw = h * w
    pp = h1_ref.shape[2]
    a1 = jnp.maximum(h1_ref[0].astype(jnp.float32) * sc_ref[...] + sh_ref[...],
                     0.0)                                      # (hw, pp) f32

    # Build the three kw-shifted copies via sublane rolls on the flat (hw, pp)
    # slab; the wrap at image-row boundaries is exactly the column that must be
    # zero-padded, so a single mask per shift fixes both.
    rolled_l = pltpu.roll(a1, shift=1, axis=0).reshape(h, w, pp)       # a1[i, j-1]
    rolled_r = pltpu.roll(a1, shift=hw - 1, axis=0).reshape(h, w, pp)  # a1[i, j+1]
    a3 = a1.reshape(h, w, pp)
    col = lax.broadcasted_iota(jnp.int32, (h, w, pp), 1)
    left = jnp.where(col == 0, 0.0, rolled_l)                  # kw = 0
    right = jnp.where(col == w - 1, 0.0, rolled_r)             # kw = 2
    stk = jnp.concatenate([left, a3, right], axis=-1).astype(jnp.bfloat16)

    # Zero only the 1-row top/bottom halo; the interior is fully overwritten.
    zrow = jnp.zeros((w, 3 * pp), jnp.bfloat16)
    astk_ref[0] = zrow
    astk_ref[h + 1] = zrow
    astk_ref[1:h + 1] = stk

    acc = jnp.zeros((hw, pp), jnp.float32)
    for kh in range(3):
        blk = astk_ref[kh:kh + h]                              # (h, w, 3pp) view
        acc = acc + jnp.dot(blk.reshape(hw, 3 * pp), w2_ref[kh],
                            preferred_element_type=jnp.float32)
    h2_ref[0] = acc.astype(jnp.bfloat16)
    s = jnp.sum(acc, axis=0, keepdims=True)
    ss = jnp.sum(acc * acc, axis=0, keepdims=True)
    st_ref[0] = jnp.concatenate([s, ss], axis=0)               # (2, Pp)


# ------------------------------ pass 3 kernel ----------------------------------
def _bn2_conv3_kernel(h2_ref, sc_ref, sh_ref, w3_ref, h3_ref, st_ref):
    """BN2+ReLU, conv3 1x1 GEMM, BN3 (sum, sumsq) partials."""
    a2 = jnp.maximum(h2_ref[0].astype(jnp.float32) * sc_ref[...] + sh_ref[...],
                     0.0).astype(jnp.bfloat16)
    h3 = jnp.dot(a2, w3_ref[...], preferred_element_type=jnp.float32)
    h3_ref[0] = h3.astype(jnp.bfloat16)
    s = jnp.sum(h3, axis=0, keepdims=True)
    ss = jnp.sum(h3 * h3, axis=0, keepdims=True)
    st_ref[0, 0] = jnp.concatenate([s, ss], axis=0)            # (2, C4p)


# ------------------------------ pass 4 kernel ----------------------------------
def _bn3_eca_out_kernel(h3_ref, sc_ref, sh_ref, gate_ref, res_ref, y_ref):
    """BN3, per-image ECA channel gate, residual add, final ReLU (pure stream)."""
    h3 = h3_ref[0].astype(jnp.float32) * sc_ref[...] + sh_ref[...]
    y = jnp.maximum(h3 * gate_ref[0] + res_ref[0], 0.0)
    y_ref[0] = y.astype(y_ref.dtype)


# -------------------------------- wrapper --------------------------------------
def eca_bottleneck_forward(x_nchw, params):
    n, cin, h, w = x_nchw.shape
    hw = h * w
    pp = params["w1"].shape[1]
    c4p = params["w3"].shape[1]
    assert params["w1"].shape[0] == c4p, "identity residual: inplanes == planes*4"
    assert cin <= c4p

    # NCHW -> (N, H*W, C4p) channels-last, channels zero-padded to 128 lanes.
    x_nhwc = jnp.transpose(x_nchw, (0, 2, 3, 1)).astype(jnp.float32)
    x2d = jnp.pad(x_nhwc.reshape(n, hw, cin), ((0, 0), (0, 0), (0, c4p - cin)))

    thw = _pick_spatial_tile(hw)
    nt = hw // thw
    inv_count = 1.0 / float(n * hw)

    cparams2d = pltpu.CompilerParams(dimension_semantics=("parallel", "parallel"),
                                     vmem_limit_bytes=VMEM_LIMIT)
    cparams1d = pltpu.CompilerParams(dimension_semantics=("parallel",),
                                     vmem_limit_bytes=VMEM_LIMIT)

    # ---- pass 1: conv1 1x1 GEMM + BN1 partials ---------------------------------
    h1, st1 = pl.pallas_call(
        _conv1_kernel,
        grid=(n, nt),
        in_specs=[pl.BlockSpec((1, thw, c4p), lambda i, t: (i, t, 0)),
                  pl.BlockSpec((c4p, pp), lambda i, t: (0, 0))],
        out_specs=(pl.BlockSpec((1, thw, pp), lambda i, t: (i, t, 0)),
                   pl.BlockSpec((1, 1, 2, pp), lambda i, t: (i, t, 0, 0))),
        out_shape=(jax.ShapeDtypeStruct((n, hw, pp), jnp.bfloat16),
                   jax.ShapeDtypeStruct((n, nt, 2, pp), jnp.float32)),
        compiler_params=cparams2d,
        cost_estimate=pl.CostEstimate(
            flops=2 * n * hw * c4p * pp, transcendentals=0,
            bytes_accessed=n * hw * c4p * 4 + c4p * pp * 2 + n * hw * pp * 2),
    )(x2d, params["w1"])

    sc1, sh1 = _bn_affine(st1, params["g1"], params["b1"], inv_count)

    # ---- pass 2: BN1+ReLU, 3x3 conv2 (3 matmuls, K=3*pp) + BN2 partials --------
    k2 = functools.partial(_bn1_conv2_kernel, h=h, w=w)
    h2, st2 = pl.pallas_call(
        k2,
        grid=(n,),
        in_specs=[pl.BlockSpec((1, hw, pp), lambda i: (i, 0, 0)),
                  pl.BlockSpec((1, pp), lambda i: (0, 0)),
                  pl.BlockSpec((1, pp), lambda i: (0, 0)),
                  pl.BlockSpec((3, 3 * pp, pp), lambda i: (0, 0, 0))],
        out_specs=(pl.BlockSpec((1, hw, pp), lambda i: (i, 0, 0)),
                   pl.BlockSpec((1, 2, pp), lambda i: (i, 0, 0))),
        out_shape=(jax.ShapeDtypeStruct((n, hw, pp), jnp.bfloat16),
                   jax.ShapeDtypeStruct((n, 2, pp), jnp.float32)),
        scratch_shapes=[pltpu.VMEM((h + 2, w, 3 * pp), jnp.bfloat16)],
        compiler_params=cparams1d,
        cost_estimate=pl.CostEstimate(
            flops=2 * n * hw * 9 * pp * pp, transcendentals=0,
            bytes_accessed=2 * n * hw * pp * 2 + 9 * pp * pp * 2),
    )(h1, sc1, sh1, params["w2"])

    sc2, sh2 = _bn_affine(st2, params["g2"], params["b2"], inv_count)

    # ---- pass 3: BN2+ReLU, conv3 1x1 GEMM + BN3 partials -----------------------
    h3, st3 = pl.pallas_call(
        _bn2_conv3_kernel,
        grid=(n, nt),
        in_specs=[pl.BlockSpec((1, thw, pp), lambda i, t: (i, t, 0)),
                  pl.BlockSpec((1, pp), lambda i, t: (0, 0)),
                  pl.BlockSpec((1, pp), lambda i, t: (0, 0)),
                  pl.BlockSpec((pp, c4p), lambda i, t: (0, 0))],
        out_specs=(pl.BlockSpec((1, thw, c4p), lambda i, t: (i, t, 0)),
                   pl.BlockSpec((1, 1, 2, c4p), lambda i, t: (i, t, 0, 0))),
        out_shape=(jax.ShapeDtypeStruct((n, hw, c4p), jnp.bfloat16),
                   jax.ShapeDtypeStruct((n, nt, 2, c4p), jnp.float32)),
        compiler_params=cparams2d,
        cost_estimate=pl.CostEstimate(
            flops=2 * n * hw * pp * c4p, transcendentals=0,
            bytes_accessed=n * hw * (pp + c4p) * 2 + pp * c4p * 2),
    )(h2, sc2, sh2, params["w3"])

    sc3, sh3 = _bn_affine(st3, params["g3"], params["b3"], inv_count)

    # ---- ECA gate: tiny, done in plain jnp from the already-computed sums ------
    # pooled = mean_HW(BN3(h3)) = scale3 * (per-image sum / HW) + shift3
    sum3 = jnp.sum(st3[:, :, 0, :], axis=1)                              # (N, C4p)
    pooled = sum3 * (1.0 / float(hw)) * sc3.reshape(-1) + sh3.reshape(-1)
    we = params["eca_w"]
    zpad = jnp.zeros((n, 1), jnp.float32)
    left = jnp.concatenate([zpad, pooled[:, :-1]], axis=1)               # c-1
    right = jnp.concatenate([pooled[:, 1:], zpad], axis=1)               # c+1
    gate = jax.nn.sigmoid(we[0] * left + we[1] * pooled + we[2] * right)
    gate = gate.reshape(n, 1, c4p).astype(jnp.float32)

    # ---- pass 4: BN3, ECA scaling, residual add, final ReLU --------------------
    y = pl.pallas_call(
        _bn3_eca_out_kernel,
        grid=(n, nt),
        in_specs=[pl.BlockSpec((1, thw, c4p), lambda i, t: (i, t, 0)),
                  pl.BlockSpec((1, c4p), lambda i, t: (0, 0)),
                  pl.BlockSpec((1, c4p), lambda i, t: (0, 0)),
                  pl.BlockSpec((1, 1, c4p), lambda i, t: (i, 0, 0)),
                  pl.BlockSpec((1, thw, c4p), lambda i, t: (i, t, 0))],
        out_specs=pl.BlockSpec((1, thw, c4p), lambda i, t: (i, t, 0)),
        out_shape=jax.ShapeDtypeStruct((n, hw, c4p), jnp.float32),
        compiler_params=cparams2d,
        cost_estimate=pl.CostEstimate(
            flops=4 * n * hw * c4p, transcendentals=0,
            bytes_accessed=n * hw * c4p * (2 + 4 + 4)),
    )(h3, sc3, sh3, gate, x2d)

    y = y.reshape(n, h, w, c4p)[..., :cin]
    return jnp.transpose(y, (0, 3, 1, 2))                               # back to NCHW


# ----------------------------- parameter setup ---------------------------------
def init_params(key, inplanes, planes, k_size=3):
    assert k_size == 3, "kernel implements the default ECA k_size=3"
    c4 = planes * 4
    assert inplanes == c4, "identity residual requires inplanes == planes*4"
    pp = _round_up(planes)
    c4p = _round_up(c4)

    ks = jax.random.split(key, 10)
    scale = 0.1
    # PyTorch weight layouts: conv1 (P,Cin,1,1), conv2 (P,P,3,3),
    # conv3 (4P,P,1,1), eca Conv1d (1,1,k).
    w1_t = scale * jax.random.normal(ks[0], (planes, inplanes), jnp.float32)
    w2_t = scale * jax.random.normal(ks[1], (planes, planes, 3, 3), jnp.float32)
    w3_t = scale * jax.random.normal(ks[2], (c4, planes), jnp.float32)
    eca_w = scale * jax.random.normal(ks[3], (k_size,), jnp.float32)

    def bn(kg, kb, c, cpad):
        g = 1.0 + 0.1 * jax.random.normal(kg, (1, c), jnp.float32)
        b = 0.1 * jax.random.normal(kb, (1, c), jnp.float32)
        return (jnp.pad(g, ((0, 0), (0, cpad - c))),
                jnp.pad(b, ((0, 0), (0, cpad - c))))

    g1, b1 = bn(ks[4], ks[5], planes, pp)
    g2, b2 = bn(ks[6], ks[7], planes, pp)
    g3, b3 = bn(ks[8], ks[9], c4, c4p)

    # Kernel-ready layouts, channel dims zero-padded to multiples of 128 lanes.
    w1 = jnp.pad(w1_t.T, ((0, c4p - inplanes), (0, pp - planes)))          # (C4p, Pp)
    w2 = jnp.transpose(w2_t, (2, 3, 1, 0))                                 # (kh, kw, ci, co)
    w2 = jnp.pad(w2, ((0, 0), (0, 0), (0, pp - planes), (0, pp - planes)))
    w2 = w2.reshape(3, 3 * pp, pp)                                         # kw stacked on K
    w3 = jnp.pad(w3_t.T, ((0, pp - planes), (0, c4p - c4)))                # (Pp, C4p)

    return dict(
        w1=w1.astype(jnp.bfloat16),
        w2=w2.astype(jnp.bfloat16),
        w3=w3.astype(jnp.bfloat16),
        g1=g1, b1=b1, g2=g2, b2=b2, g3=g3, b3=b3,
        eca_w=eca_w,
    )


if __name__ == "__main__":
    key = jax.random.PRNGKey(0)
    k_x, k_p = jax.random.split(key)
    N, PLANES = 2, 4
    INPLANES = PLANES * 4         # identity residual path (downsample=None)
    H = W = 16
    x = jax.random.normal(k_x, (N, INPLANES, H, W), jnp.float32)
    params = init_params(k_p, INPLANES, PLANES, k_size=3)
    out = eca_bottleneck_forward(x, params)
    jax.block_until_ready(out)
    assert out.shape == (N, PLANES * 4, H, W)
    assert bool(jnp.all(jnp.isfinite(out)))
    print("KERNEL_OK")
</pallas_src>

<mosaic_0001>
module attributes {stable_mosaic.version = 11 : i64} {
  func.func @_conv1_kernel(%arg0: i32, %arg1: i32, %arg2: memref<1x256x128xf32, #tpu.memory_space<vmem>>, %arg3: memref<128x128xbf16, #tpu.memory_space<vmem>>, %arg4: memref<1x256x128xbf16, #tpu.memory_space<vmem>>, %arg5: memref<1x1x2x128xf32, #tpu.memory_space<vmem>>) attributes {dimension_semantics = [#tpu.dimension_semantics<parallel>, #tpu.dimension_semantics<parallel>], iteration_bounds = array<i64: 2, 1>, scalar_prefetch = 0 : i64, scratch_operands = 0 : i64, tpu.core_type = #tpu.core_type<tc>, window_params = [{transform_indices = @transform_0, window_bounds = array<i64: 1, 256, 128>}, {pipeline_mode = #tpu.pipeline_mode<synchronous>, transform_indices = @transform_1, window_bounds = array<i64: 128, 128>}, {transform_indices = @transform_2, window_bounds = array<i64: 1, 256, 128>}, {transform_indices = @transform_3, window_bounds = array<i64: 1, 1, 2, 128>}]} {
    %c0 = arith.constant 0 : index
    %c0_0 = arith.constant 0 : index
    %c0_1 = arith.constant 0 : index
    %0 = vector.load %arg2[%c0, %c0_0, %c0_1] : memref<1x256x128xf32, #tpu.memory_space<vmem>>, vector<1x256x128xf32>
    %1 = vector.shape_cast %0 : vector<1x256x128xf32> to vector<256x128xf32>
    %2 = arith.truncf %1 : vector<256x128xf32> to vector<256x128xbf16>
    %c0_2 = arith.constant 0 : index
    %c0_3 = arith.constant 0 : index
    %3 = vector.load %arg3[%c0_2, %c0_3] : memref<128x128xbf16, #tpu.memory_space<vmem>>, vector<128x128xbf16>
    %cst = arith.constant dense<0.000000e+00> : vector<256x128xf32>
    %4 = tpu.matmul %2, %3, %cst {dimension_numbers = #tpu.dot_dimension_numbers<[1], [0], [0], [1], [0, 0, 1, 1], [], []>} : vector<256x128xbf16>, vector<128x128xbf16>, vector<256x128xf32> -> vector<256x128xf32>
    %5 = arith.truncf %4 : vector<256x128xf32> to vector<256x128xbf16>
    %c0_4 = arith.constant 0 : index
    %c0_5 = arith.constant 0 : index
    %c0_6 = arith.constant 0 : index
    %6 = vector.load %arg4[%c0_4, %c0_5, %c0_6] : memref<1x256x128xbf16, #tpu.memory_space<vmem>>, vector<1x256x128xbf16>
    %7 = vector.shape_cast %6 : vector<1x256x128xbf16> to vector<256x128xbf16>
    %8 = vector.shape_cast %5 : vector<256x128xbf16> to vector<1x256x128xbf16>
    tpu.vector_store %arg4[%c0_4, %c0_5, %c0_6], %8 {strides = array<i32>} : memref<1x256x128xbf16, #tpu.memory_space<vmem>>, vector<1x256x128xbf16>,
    %cst_7 = arith.constant dense<0.000000e+00> : vector<128xf32>
    %9 = vector.multi_reduction <add>, %4, %cst_7 [0] : vector<256x128xf32> to vector<128xf32>
    %10 = vector.shape_cast %9 : vector<128xf32> to vector<1x128xf32>
    %11 = arith.mulf %4, %4 : vector<256x128xf32>
    %cst_8 = arith.constant dense<0.000000e+00> : vector<128xf32>
    %12 = vector.multi_reduction <add>, %11, %cst_8 [0] : vector<256x128xf32> to vector<128xf32>
    %13 = vector.shape_cast %12 : vector<128xf32> to vector<1x128xf32>
    %14 = tpu.concatenate %10, %13 in 0 : vector<1x128xf32>, vector<1x128xf32> -> vector<2x128xf32>
    %c0_9 = arith.constant 0 : index
    %c0_10 = arith.constant 0 : index
    %c0_11 = arith.constant 0 : index
    %c0_12 = arith.constant 0 : index
    %15 = vector.load %arg5[%c0_9, %c0_10, %c0_11, %c0_12] : memref<1x1x2x128xf32, #tpu.memory_space<vmem>>, vector<1x1x2x128xf32>
    %16 = vector.shape_cast %15 : vector<1x1x2x128xf32> to vector<2x128xf32>
    %17 = vector.shape_cast %14 : vector<2x128xf32> to vector<1x1x2x128xf32>
    tpu.vector_store %arg5[%c0_9, %c0_10, %c0_11, %c0_12], %17 {strides = array<i32>} : memref<1x1x2x128xf32, #tpu.memory_space<vmem>>, vector<1x1x2x128xf32>,
    return
  }
  func.func @transform_0(%arg0: i32, %arg1: i32) -> (i32, i32, i32) {
    %c0_i32 = arith.constant 0 : i32
    %c0_i32_0 = arith.constant 0 : i32
    return %arg0, %arg1, %c0_i32 : i32, i32, i32
  }
  func.func @transform_1(%arg0: i32, %arg1: i32) -> (i32, i32) {
    %c0_i32 = arith.constant 0 : i32
    %c0_i32_0 = arith.constant 0 : i32
    %c0_i32_1 = arith.constant 0 : i32
    return %c0_i32, %c0_i32_0 : i32, i32
  }
  func.func @transform_2(%arg0: i32, %arg1: i32) -> (i32, i32, i32) {
    %c0_i32 = arith.constant 0 : i32
    %c0_i32_0 = arith.constant 0 : i32
    return %arg0, %arg1, %c0_i32 : i32, i32, i32
  }
  func.func @transform_3(%arg0: i32, %arg1: i32) -> (i32, i32, i32, i32) {
    %c0_i32 = arith.constant 0 : i32
    %c0_i32_0 = arith.constant 0 : i32
    %c0_i32_1 = arith.constant 0 : i32
    return %arg0, %arg1, %c0_i32, %c0_i32_0 : i32, i32, i32, i32
  }
}

</mosaic_0001>

<llo_original>
// kernel: tpu_custom_call.1
$region0: #{tpu_custom_call.1}
  #allocation0 [shape = 'u32[]', space=smem, size = 0x4, offset = 0x4, fixed_abs, tag = 'smem constant byte address 0x4 - core index']
  #allocation1 [shape = 'u32[144,128]{1,0:T(1,128)}', space=vmem, size = 0x12000, scoped, tag = 'internal scratch']
  %s0 = inlined_call_operand.hbm [shape: f32[2,256,128], index: 0, kind: input, shape index: {}]
  %s1 = inlined_call_operand.hbm [shape: bf16[128,128], index: 1, kind: input, shape index: {}]
  %s2 = inlined_call_operand.hbm [shape: bf16[2,256,128], index: 2, kind: output, shape index: {0}]
  %s3 = inlined_call_operand.hbm [shape: f32[2,1,2,128], index: 3, kind: output, shape index: {1}]
  %4 = xla_tuple %s2, %s3
  %s5 = sld [smem:[#allocation0]]
  $region57: #{tpu_custom_call.1} parent=0
    _
  %s7 = ssub.s32 1, %s5
  %s8 = scalar_select 0, %s7, %s5
  $region1: #{tpu_custom_call.1} parent=0
    #allocation2 [shape = 'u8[262144]{0}', space=vmem, size = 0x40000, scoped, tag = 'input window, operand 0']
    #allocation3 [shape = 's32[2]{0}', space=sflag, size = 0x8, scoped, tag = 'scoped memory for tpu_custom_call.1']
    #allocation4 [shape = 's32[2]{0}', space=sflag, size = 0x8, scoped, tag = 'scoped memory for tpu_custom_call.1']
    #allocation5 [shape = 'u8[32768]{0}', space=vmem, size = 0x8000, scoped, tag = 'input window, operand 1, single buffered']
    #allocation6 [shape = 's32[1]{0}', space=sflag, size = 0x4, scoped, tag = 'scoped memory for tpu_custom_call.1']
    #allocation7 [shape = 'u8[131072]{0}', space=vmem, size = 0x20000, scoped, tag = 'output window, operand 0']
    #allocation8 [shape = 'u8[2048]{0}', space=vmem, size = 0x800, scoped, tag = 'output window, operand 1']
    #allocation9 [shape = 's32[2]{0}', space=sflag, size = 0x8, scoped, tag = 'scoped memory for tpu_custom_call.1']
    %9 = vsyncpa [#allocation3], 0
    %s10 = scalar_lea.sflag [#allocation3], 1
    %11 = vsyncpa %s10, 0
    %12 = vsyncpa [#allocation6], 0
    %13 = vsyncpa [#allocation4], 0
    %s14 = scalar_lea.sflag [#allocation4], 1
    %15 = vsyncpa %s14, 0
    %16 = vsyncpa [#allocation9], 0
    %s17 = scalar_lea.sflag [#allocation9], 1
    %18 = vsyncpa %s17, 0
    loop: start=0, step=1, limit=4
    $region2: #{tpu_custom_call.1} parent=1 // loop_pre_header
      _
    $region3: #{tpu_custom_call.1} parent=1 // loop_header
      %s20 = sphi 0, %s24
      %p21 = scmp.ge.s32.totalorder %s20, 4
      %s27 = sphi 0, %s39
      %s28 = sphi 0, %s35
      %s29 = sphi 0, %s27
      %s30 = sphi 0, %s28
      %s31 = sphi 0, %s29
      %s32 = sphi 0, %s30
      %s44 = sphi 0, %s46
      %s47 = sphi 0, %s44
      %s48 = sphi 0, %s47
      %s64 = sphi 0, %s48
      %s68 = sphi 0, %s68
      %s70 = sphi 0, %s68
      %s71 = sphi 0, %s70
      %s85 = sphi 0, %s71
      %s93 = sphi 0, %s95
      %s96 = sphi 0, %s93
      %s97 = sphi 0, %s96
      %s113 = sphi 0, %s97
      %s121 = sphi 0, %s123
      %s124 = sphi 0, %s121
      %s125 = sphi 0, %s124
      %s141 = sphi 0, %s125
    $region4: #{tpu_custom_call.1} parent=1 // loop_header_branch
      %23 = sbr.rel (%p21) target = $region8
    $region5: #{tpu_custom_call.1} parent=1 // loop_body
      %s25 = ssub.s32 %s20, 1
      %s26 = ssub.s32 %s20, 2
      %s33 = sadd.s32 1, %s28
      %p34 = scmp.ge.s32.totalorder %s33, 1
      %s35 = scalar_select %p34, 0, %s33
      %s36 = sadd.s32 1, %s27
      %s37 = scalar_select %p34, %s36, %s27
      %p38 = scmp.ge.s32.totalorder %s37, 2
      %s39 = scalar_select %p38, 0, %s37
      %s40 = ssub.s32 %s27, %s39
      %s41 = ssub.s32 %s28, %s35
      %s42 = sor.u32 %s40, %s41
      %p43 = scmp.eq.s32.totalorder %s42, 0
      %s45 = sadd.s32 %s44, 1
      %s46 = scalar_select %p43, %s44, %s45
      %p49 = pneg %p43
      %p50 = scmp.eq.s32.totalorder %s20, 1
      %p51 = por %p49, %p50
      %p52 = scmp.ne.s32.totalorder %s44, %s47
      %p53 = scmp.eq.s32.totalorder %s20, 0
      %p54 = por %p52, %p53
      %p55 = scmp.ne.s32.totalorder %s44, %s47
      %p56 = scmp.eq.s32.totalorder %s25, 1
      %p57 = por %p55, %p56
      %p58 = scmp.ne.s32.totalorder %s47, %s48
      %p59 = scmp.eq.s32.totalorder %s25, 0
      %p60 = por %p58, %p59
      %p61 = scmp.ne.s32.totalorder %s47, %s48
      %p62 = scmp.eq.s32.totalorder %s26, 1
      %p63 = por %p61, %p62
      %p65 = scmp.ne.s32.totalorder %s48, %s64
      %p66 = scmp.eq.s32.totalorder %s26, 0
      %p67 = por %p65, %p66
      %s69 = sadd.s32 %s68, 1
      %p72 = scmp.eq.s32.totalorder %s20, 1
      %p73 = scmp.ne.s32.totalorder %s68, %s70
      %p74 = scmp.eq.s32.totalorder %s20, 0
      %p75 = por %p73, %p74
      %p76 = scmp.ne.s32.totalorder %s68, %s70
      %p77 = scmp.eq.s32.totalorder %s25, 1
      %p78 = por %p76, %p77
      %p79 = scmp.ne.s32.totalorder %s70, %s71
      %p80 = scmp.eq.s32.totalorder %s25, 0
      %p81 = por %p79, %p80
      %p82 = scmp.ne.s32.totalorder %s70, %s71
      %p83 = scmp.eq.s32.totalorder %s26, 1
      %p84 = por %p82, %p83
      %p86 = scmp.ne.s32.totalorder %s71, %s85
      %p87 = scmp.eq.s32.totalorder %s26, 0
      %p88 = por %p86, %p87
      %s89 = ssub.s32 %s27, %s39
      %s90 = ssub.s32 %s28, %s35
      %s91 = sor.u32 %s89, %s90
      %p92 = scmp.eq.s32.totalorder %s91, 0
      %s94 = sadd.s32 %s93, 1
      %s95 = scalar_select %p92, %s93, %s94
      %p98 = pneg %p92
      %p99 = scmp.eq.s32.totalorder %s20, 1
      %p100 = por %p98, %p99
      %p101 = scmp.ne.s32.totalorder %s93, %s96
      %p102 = scmp.eq.s32.totalorder %s20, 0
      %p103 = por %p101, %p102
      %p104 = scmp.ne.s32.totalorder %s93, %s96
      %p105 = scmp.eq.s32.totalorder %s25, 1
      %p106 = por %p104, %p105
      %p107 = scmp.ne.s32.totalorder %s96, %s97
      %p108 = scmp.eq.s32.totalorder %s25, 0
      %p109 = por %p107, %p108
      %p110 = scmp.ne.s32.totalorder %s96, %s97
      %p111 = scmp.eq.s32.totalorder %s26, 1
      %p112 = por %p110, %p111
      %p114 = scmp.ne.s32.totalorder %s97, %s113
      %p115 = scmp.eq.s32.totalorder %s26, 0
      %p116 = por %p114, %p115
      %s117 = ssub.s32 %s27, %s39
      %s118 = ssub.s32 %s28, %s35
      %s119 = sor.u32 %s117, %s118
      %p120 = scmp.eq.s32.totalorder %s119, 0
      %s122 = sadd.s32 %s121, 1
      %s123 = scalar_select %p120, %s121, %s122
      %p126 = pneg %p120
      %p127 = scmp.eq.s32.totalorder %s20, 1
      %p128 = por %p126, %p127
      %p129 = scmp.ne.s32.totalorder %s121, %s124
      %p130 = scmp.eq.s32.totalorder %s20, 0
      %p131 = por %p129, %p130
      %p132 = scmp.ne.s32.totalorder %s121, %s124
      %p133 = scmp.eq.s32.totalorder %s25, 1
      %p134 = por %p132, %p133
      %p135 = scmp.ne.s32.totalorder %s124, %s125
      %p136 = scmp.eq.s32.totalorder %s25, 0
      %p137 = por %p135, %p136
      %p138 = scmp.ne.s32.totalorder %s124, %s125
      %p139 = scmp.eq.s32.totalorder %s26, 1
      %p140 = por %p138, %p139
      %p142 = scmp.ne.s32.totalorder %s125, %s141
      %p143 = scmp.eq.s32.totalorder %s26, 0
      %p144 = por %p142, %p143
      %p145 = scmp.le.s32.totalorder 1, %s20
      %p146 = scmp.lt.s32.totalorder %s20, 3
      %p147 = pnand %p145, %p146
      %p148 = pneg %p147
      // Predicated region
      $region9: #{tpu_custom_call.1} parent=5 // pred_check
        _
      $region10: #{tpu_custom_call.1} parent=5 // pred_check_branch
        %150 = sbr.rel (%p147) target = $region12
      $region11: #{tpu_custom_call.1} parent=5 // pred_region
        %s151 = ssub.s32 %s20, 1
        // Predicated region
        $region13: #{tpu_custom_call.1} parent=11 // pred_check
          %p152 = pneg %p81
        $region14: #{tpu_custom_call.1} parent=11 // pred_check_branch
          %154 = sbr.rel (%p152) target = $region16
        $region15: #{tpu_custom_call.1} parent=11 // pred_region
          %s156 = ssub.s32 1024, 1024
          %157 = vsyncadd [#allocation6], %s156
          %s158 = sshll.u32 [#allocation5], 4
          %s159 = int_to_ptr.vmem [resolvable:$true] %s158
          %164 = dma.hbm_to_vmem [thread:$0]  %s1, 1024, %s159, [#allocation6], 64, 64, 4
        $region16: #{tpu_custom_call.1} parent=11 // pred_fallthru
          _
      $region12: #{tpu_custom_call.1} parent=5 // pred_fallthru
        _
      %p165 = scmp.lt.s32.totalorder %s20, 2
      // Predicated region
      $region17: #{tpu_custom_call.1} parent=5 // pred_check
        %p166 = pneg %p165
      $region18: #{tpu_custom_call.1} parent=5 // pred_check_branch
        %168 = sbr.rel (%p166) target = $region20
      $region19: #{tpu_custom_call.1} parent=5 // pred_region
        // Predicated region
        $region21: #{tpu_custom_call.1} parent=19 // pred_check
          %p169 = pneg %p54
        $region22: #{tpu_custom_call.1} parent=19 // pred_check_branch
          %171 = sbr.rel (%p169) target = $region24
        $region23: #{tpu_custom_call.1} parent=19 // pred_region
          %s172 = sand.u32 %s44, 1
          %s173 = scalar_lea.sflag [#allocation3], %s172
          %s174 = sand.u32 %s44, 1
          %s175 = smul.addr %s174, 256
          %s176 = scalar_lea.vmem [#allocation2], %s175
          %s177 = smul.u32 32, %s28
          %s179 = ssub.s32 4096, 4096
          %180 = vsyncadd %s173, %s179
          %s181 = smul.addr %s27, 32
          %s182 = sadd.s32 %s177, %s181
          %s183 = smul.addr %s182, 128
          %s184 = scalar_lea.hbm %s0, %s183
          %s185 = sshll.u32 %s176, 4
          %s186 = int_to_ptr.vmem [resolvable:$true] %s185
          %191 = dma.hbm_to_vmem [thread:$0]  %s184, 4096, %s186, %s173, 128, 128, 8
        $region24: #{tpu_custom_call.1} parent=19 // pred_fallthru
          _
      $region20: #{tpu_custom_call.1} parent=5 // pred_fallthru
        _
      %p192 = scmp.le.s32.totalorder 1, %s20
      %p193 = scmp.lt.s32.totalorder %s20, 3
      %p194 = pnand %p192, %p193
      %p195 = pneg %p194
      // Predicated region
      $region25: #{tpu_custom_call.1} parent=5 // pred_check
        _
      $region26: #{tpu_custom_call.1} parent=5 // pred_check_branch
        %197 = sbr.rel (%p194) target = $region28
      $region27: #{tpu_custom_call.1} parent=5 // pred_region
        %s198 = ssub.s32 %s20, 1
        %s199 = sand.u32 %s47, 1
        %s200 = scalar_lea.sflag [#allocation3], %s199
        %s201 = sand.u32 %s47, 1
        %s202 = smul.addr %s201, 256
        %s203 = scalar_lea.vmem [#allocation2], %s202
        // Predicated region
        $region29: #{tpu_custom_call.1} parent=27 // pred_check
          %p204 = pneg %p60
        $region30: #{tpu_custom_call.1} parent=27 // pred_check_branch
          %206 = sbr.rel (%p204) target = $region32
        $region31: #{tpu_custom_call.1} parent=27 // pred_region
          %207 = dma.done %s200, 4096
        $region32: #{tpu_custom_call.1} parent=27 // pred_fallthru
          _
        // Predicated region
        $region33: #{tpu_custom_call.1} parent=27 // pred_check
          %p208 = pneg %p81
        $region34: #{tpu_custom_call.1} parent=27 // pred_check_branch
          %210 = sbr.rel (%p208) target = $region36
        $region35: #{tpu_custom_call.1} parent=27 // pred_region
          %211 = dma.done [#allocation6], 1024
        $region36: #{tpu_custom_call.1} parent=27 // pred_fallthru
          _
        %s212 = sand.u32 %s47, 1
        %s213 = scalar_lea.sflag [#allocation3], %s212
        %s214 = sand.u32 %s47, 1
        %s215 = smul.addr %s214, 256
        %s216 = scalar_lea.vmem [#allocation2], %s215
        %p217 = pneg %p60
        %p218 = pneg %p57
        %p219 = pneg %p81
        %p220 = pneg %p78
        %p221 = pneg %p109
        %p222 = pneg %p106
        %s223 = sand.u32 %s96, 1
        %s224 = scalar_lea.sflag [#allocation4], %s223
        %s225 = sand.u32 %s96, 1
        %s226 = smul.addr %s225, 128
        %s227 = scalar_lea.vmem [#allocation7], %s226
        %p228 = pneg %p137
        %p229 = pneg %p134
        %s230 = sand.u32 %s124, 1
        %s231 = scalar_lea.sflag [#allocation9], %s230
        %s232 = sand.u32 %s124, 1
        %s233 = smul.addr %s232, 2
        %s234 = scalar_lea.vmem [#allocation8], %s233
        %s235 = smul.u32 32, %s30
        %s236 = smul.u32 32, %s30
        %v238 = vld [vmem:[%s203] sm:$0xff]
        %v239 = vld [vmem:[%s203 + $0x8] sm:$0xff]
        %v240 = vld [vmem:[%s203 + $0x10] sm:$0xff]
        %v241 = vld [vmem:[%s203 + $0x18] sm:$0xff]
        %v242 = vld [vmem:[%s203 + $0x20] sm:$0xff]
        %v243 = vld [vmem:[%s203 + $0x28] sm:$0xff]
        %v244 = vld [vmem:[%s203 + $0x30] sm:$0xff]
        %v245 = vld [vmem:[%s203 + $0x38] sm:$0xff]
        %v246 = vld [vmem:[%s203 + $0x40] sm:$0xff]
        %v247 = vld [vmem:[%s203 + $0x48] sm:$0xff]
        %v248 = vld [vmem:[%s203 + $0x50] sm:$0xff]
        %v249 = vld [vmem:[%s203 + $0x58] sm:$0xff]
        %v250 = vld [vmem:[%s203 + $0x60] sm:$0xff]
        %v251 = vld [vmem:[%s203 + $0x68] sm:$0xff]
        %v252 = vld [vmem:[%s203 + $0x70] sm:$0xff]
        %v253 = vld [vmem:[%s203 + $0x78] sm:$0xff]
        %v254 = vld [vmem:[%s203 + $0x80] sm:$0xff]
        %v255 = vld [vmem:[%s203 + $0x88] sm:$0xff]
        %v256 = vld [vmem:[%s203 + $0x90] sm:$0xff]
        %v257 = vld [vmem:[%s203 + $0x98] sm:$0xff]
        %v258 = vld [vmem:[%s203 + $0xa0] sm:$0xff]
        %v259 = vld [vmem:[%s203 + $0xa8] sm:$0xff]
        %v260 = vld [vmem:[%s203 + $0xb0] sm:$0xff]
        %v261 = vld [vmem:[%s203 + $0xb8] sm:$0xff]
        %v262 = vld [vmem:[%s203 + $0xc0] sm:$0xff]
        %v263 = vld [vmem:[%s203 + $0xc8] sm:$0xff]
        %v264 = vld [vmem:[%s203 + $0xd0] sm:$0xff]
        %v265 = vld [vmem:[%s203 + $0xd8] sm:$0xff]
        %v266 = vld [vmem:[%s203 + $0xe0] sm:$0xff]
        %v267 = vld [vmem:[%s203 + $0xe8] sm:$0xff]
        %v268 = vld [vmem:[%s203 + $0xf0] sm:$0xff]
        %v269 = vld [vmem:[%s203 + $0xf8] sm:$0xff]
        %v270 = vpack.c.bf16 %v239, %v238
        %v271 = vpack.c.bf16 %v241, %v240
        %v272 = vpack.c.bf16 %v243, %v242
        %v273 = vpack.c.bf16 %v245, %v244
        %v274 = vpack.c.bf16 %v247, %v246
        %v275 = vpack.c.bf16 %v249, %v248
        %v276 = vpack.c.bf16 %v251, %v250
        %v277 = vpack.c.bf16 %v253, %v252
        %v278 = vpack.c.bf16 %v255, %v254
        %v279 = vpack.c.bf16 %v257, %v256
        %v280 = vpack.c.bf16 %v259, %v258
        %v281 = vpack.c.bf16 %v261, %v260
        %v282 = vpack.c.bf16 %v263, %v262
        %v283 = vpack.c.bf16 %v265, %v264
        %v284 = vpack.c.bf16 %v267, %v266
        %v285 = vpack.c.bf16 %v269, %v268
        %v286 = vld [vmem:[#allocation5] sm:$0xf]
        %v287 = vld [vmem:[#allocation5 + $0x4] sm:$0xf]
        %v288 = vld [vmem:[#allocation5 + $0x8] sm:$0xf]
        %v289 = vld [vmem:[#allocation5 + $0xc] sm:$0xf]
        %v290 = vld [vmem:[#allocation5 + $0x10] sm:$0xf]
        %v291 = vld [vmem:[#allocation5 + $0x14] sm:$0xf]
        %v292 = vld [vmem:[#allocation5 + $0x18] sm:$0xf]
        %v293 = vld [vmem:[#allocation5 + $0x1c] sm:$0xf]
        %v294 = vld [vmem:[#allocation5 + $0x20] sm:$0xf]
        %v295 = vld [vmem:[#allocation5 + $0x24] sm:$0xf]
        %v296 = vld [vmem:[#allocation5 + $0x28] sm:$0xf]
        %v297 = vld [vmem:[#allocation5 + $0x2c] sm:$0xf]
        %v298 = vld [vmem:[#allocation5 + $0x30] sm:$0xf]
        %v299 = vld [vmem:[#allocation5 + $0x34] sm:$0xf]
        %v300 = vld [vmem:[#allocation5 + $0x38] sm:$0xf]
        %v301 = vld [vmem:[#allocation5 + $0x3c] sm:$0xf]
        %v318 = vunpack.c.l.b16 %v286
        %v319 = vunpack.c.l.b16 %v287
        %v320 = vunpack.c.l.b16 %v288
        %v321 = vunpack.c.l.b16 %v289
        %v322 = vunpack.c.l.b16 %v290
        %v323 = vunpack.c.l.b16 %v291
        %v324 = vunpack.c.l.b16 %v292
        %v325 = vunpack.c.l.b16 %v293
        %v326 = vunpack.c.l.b16 %v294
        %v327 = vunpack.c.l.b16 %v295
        %v328 = vunpack.c.l.b16 %v296
        %v329 = vunpack.c.l.b16 %v297
        %v330 = vunpack.c.l.b16 %v298
        %v331 = vunpack.c.l.b16 %v299
        %v332 = vunpack.c.l.b16 %v300
        %v333 = vunpack.c.l.b16 %v301
        %v334 = vpack.c.b16 %v319, %v318
        %v335 = vpack.c.b16 %v321, %v320
        %v336 = vpack.c.b16 %v323, %v322
        %v337 = vpack.c.b16 %v325, %v324
        %v338 = vpack.c.b16 %v327, %v326
        %v339 = vpack.c.b16 %v329, %v328
        %v340 = vpack.c.b16 %v331, %v330
        %v341 = vpack.c.b16 %v333, %v332
        %350 = vmatprep.subr.bf16.mxu0 0
        %351 = vmatpush1.bf16.msra.mxu0 %v341
        %352 = vmatprep.subr.bf16.mxu0 0
        %353 = vmatpush1.bf16.msra.mxu0 %v340
        %354 = vmatprep.subr.bf16.mxu0 0
        %355 = vmatpush1.bf16.msra.mxu0 %v339
        %356 = vmatprep.subr.bf16.mxu0 0
        %357 = vmatpush1.bf16.msra.mxu0 %v338
        %358 = vmatprep.subr.bf16.mxu0 0
        %359 = vmatpush1.bf16.msra.mxu0 %v337
        %360 = vmatprep.subr.bf16.mxu0 0
        %361 = vmatpush1.bf16.msra.mxu0 %v336
        %362 = vmatprep.subr.bf16.mxu0 0
        %363 = vmatpush1.bf16.msra.mxu0 %v335
        %364 = vmatprep.subr.bf16.mxu0 0
        %365 = vmatpush1.bf16.msra.mxu0 %v334
        %366 = vmatprep.subr.bf16.mxu0 0
        %367 = vmatpush2.bf16.msra.mxu0 0
        %368 = vmatprep.subr.bf16.mxu0 0
        %369 = vmatpush2.bf16.msra.mxu0 0
        %370 = vmatprep.subr.bf16.mxu0 0
        %371 = vmatpush2.bf16.msra.mxu0 0
        %372 = vmatprep.subr.bf16.mxu0 0
        %373 = vmatpush2.bf16.msra.mxu0 0
        %374 = vmatprep.subr.bf16.mxu0 0
        %375 = vmatpush2.bf16.msra.mxu0 0
        %376 = vmatprep.subr.bf16.mxu0 0
        %377 = vmatpush2.bf16.msra.mxu0 0
        %378 = vmatprep.subr.bf16.mxu0 0
        %379 = vmatpush2.bf16.msra.mxu0 0
        %380 = vmatprep.subr.bf16.mxu0 0
        %381 = vmatpush2.bf16.msra.mxu0 0
        %382 = vmatprep.mubr.bf16.mxu0 0
        %383 = vmatmul.mubr.bf16.gmra.mxu0 %v270
        %v384 = vpop.f32.mrf.mxu0
        %v385 = vadd.f32 0.0, %v384
        %v386 = vpop.f32.mrf.mxu0
        %v387 = vpop.f32.mrf.mxu0
        %v388 = vadd.f32 0.0, %v387
        %v389 = vpop.f32.mrf.mxu0
        %390 = vmatprep.mubr.bf16.mxu0 0
        %391 = vmatmul.mubr.bf16.gmra.mxu0 %v271
        %v392 = vpop.f32.mrf.mxu0
        %v393 = vadd.f32 0.0, %v392
        %v394 = vpop.f32.mrf.mxu0
        %v395 = vpop.f32.mrf.mxu0
        %v396 = vadd.f32 0.0, %v395
        %v397 = vpop.f32.mrf.mxu0
        %398 = vmatprep.mubr.bf16.mxu0 0
        %399 = vmatmul.mubr.bf16.gmra.mxu0 %v272
        %v400 = vpop.f32.mrf.mxu0
        %v401 = vadd.f32 0.0, %v400
        %v402 = vpop.f32.mrf.mxu0
        %v403 = vpop.f32.mrf.mxu0
        %v404 = vadd.f32 0.0, %v403
        %v405 = vpop.f32.mrf.mxu0
        %406 = vmatprep.mubr.bf16.mxu0 0
        %407 = vmatmul.mubr.bf16.gmra.mxu0 %v273
        %v408 = vpop.f32.mrf.mxu0
        %v409 = vadd.f32 0.0, %v408
        %v410 = vpop.f32.mrf.mxu0
        %v411 = vpop.f32.mrf.mxu0
        %v412 = vadd.f32 0.0, %v411
        %v413 = vpop.f32.mrf.mxu0
        %414 = vmatprep.mubr.bf16.mxu0 0
        %415 = vmatmul.mubr.bf16.gmra.mxu0 %v274
        %v416 = vpop.f32.mrf.mxu0
        %v417 = vadd.f32 0.0, %v416
        %v418 = vpop.f32.mrf.mxu0
        %v419 = vpop.f32.mrf.mxu0
        %v420 = vadd.f32 0.0, %v419
        %v421 = vpop.f32.mrf.mxu0
        %422 = vmatprep.mubr.bf16.mxu0 0
        %423 = vmatmul.mubr.bf16.gmra.mxu0 %v275
        %v424 = vpop.f32.mrf.mxu0
        %v425 = vadd.f32 0.0, %v424
        %v426 = vpop.f32.mrf.mxu0
        %v427 = vpop.f32.mrf.mxu0
        %v428 = vadd.f32 0.0, %v427
        %v429 = vpop.f32.mrf.mxu0
        %430 = vmatprep.mubr.bf16.mxu0 0
        %431 = vmatmul.mubr.bf16.gmra.mxu0 %v276
        %v432 = vpop.f32.mrf.mxu0
        %v433 = vadd.f32 0.0, %v432
        %v434 = vpop.f32.mrf.mxu0
        %v435 = vpop.f32.mrf.mxu0
        %v436 = vadd.f32 0.0, %v435
        %v437 = vpop.f32.mrf.mxu0
        %438 = vmatprep.mubr.bf16.mxu0 0
        %439 = vmatmul.mubr.bf16.gmra.mxu0 %v277
        %v440 = vpop.f32.mrf.mxu0
        %v441 = vadd.f32 0.0, %v440
        %v442 = vpop.f32.mrf.mxu0
        %v443 = vpop.f32.mrf.mxu0
        %v444 = vadd.f32 0.0, %v443
        %v445 = vpop.f32.mrf.mxu0
        %446 = vmatprep.mubr.bf16.mxu0 0
        %447 = vmatmul.mubr.bf16.gmra.mxu0 %v278
        %v448 = vpop.f32.mrf.mxu0
        %v449 = vadd.f32 0.0, %v448
        %v450 = vpop.f32.mrf.mxu0
        %v451 = vpop.f32.mrf.mxu0
        %v452 = vadd.f32 0.0, %v451
        %v453 = vpop.f32.mrf.mxu0
        %454 = vmatprep.mubr.bf16.mxu0 0
        %455 = vmatmul.mubr.bf16.gmra.mxu0 %v279
        %v456 = vpop.f32.mrf.mxu0
        %v457 = vadd.f32 0.0, %v456
        %v458 = vpop.f32.mrf.mxu0
        %v459 = vpop.f32.mrf.mxu0
        %v460 = vadd.f32 0.0, %v459
        %v461 = vpop.f32.mrf.mxu0
        %462 = vmatprep.mubr.bf16.mxu0 0
        %463 = vmatmul.mubr.bf16.gmra.mxu0 %v280
        %v464 = vpop.f32.mrf.mxu0
        %v465 = vadd.f32 0.0, %v464
        %v466 = vpop.f32.mrf.mxu0
        %v467 = vpop.f32.mrf.mxu0
        %v468 = vadd.f32 0.0, %v467
        %v469 = vpop.f32.mrf.mxu0
        %470 = vmatprep.mubr.bf16.mxu0 0
        %471 = vmatmul.mubr.bf16.gmra.mxu0 %v281
        %v472 = vpop.f32.mrf.mxu0
        %v473 = vadd.f32 0.0, %v472
        %v474 = vpop.f32.mrf.mxu0
        %v475 = vpop.f32.mrf.mxu0
        %v476 = vadd.f32 0.0, %v475
        %v477 = vpop.f32.mrf.mxu0
        %478 = vmatprep.mubr.bf16.mxu0 0
        %479 = vmatmul.mubr.bf16.gmra.mxu0 %v282
        %v480 = vpop.f32.mrf.mxu0
        %v481 = vadd.f32 0.0, %v480
        %v482 = vpop.f32.mrf.mxu0
        %v483 = vpop.f32.mrf.mxu0
        %v484 = vadd.f32 0.0, %v483
        %v485 = vpop.f32.mrf.mxu0
        %486 = vmatprep.mubr.bf16.mxu0 0
        %487 = vmatmul.mubr.bf16.gmra.mxu0 %v283
        %v488 = vpop.f32.mrf.mxu0
        %v489 = vadd.f32 0.0, %v488
        %v490 = vpop.f32.mrf.mxu0
        %v491 = vpop.f32.mrf.mxu0
        %v492 = vadd.f32 0.0, %v491
        %v493 = vpop.f32.mrf.mxu0
        %494 = vmatprep.mubr.bf16.mxu0 0
        %495 = vmatmul.mubr.bf16.gmra.mxu0 %v284
        %v496 = vpop.f32.mrf.mxu0
        %v497 = vadd.f32 0.0, %v496
        %v498 = vpop.f32.mrf.mxu0
        %v499 = vpop.f32.mrf.mxu0
        %v500 = vadd.f32 0.0, %v499
        %v501 = vpop.f32.mrf.mxu0
        %502 = vmatprep.mubr.bf16.mxu0 0
        %503 = vmatmul.mubr.bf16.gmra.mxu0 %v285
        %v504 = vpop.f32.mrf.mxu0
        %v505 = vadd.f32 0.0, %v504
        %v506 = vpop.f32.mrf.mxu0
        %v507 = vpop.f32.mrf.mxu0
        %v508 = vadd.f32 0.0, %v507
        %v509 = vpop.f32.mrf.mxu0
        %510 = vdwg.mxu0
        %v511 = vpack.c.bf16 %v388, %v385
        %v512 = vpack.c.bf16 %v396, %v393
        %v513 = vpack.c.bf16 %v404, %v401
        %v514 = vpack.c.bf16 %v412, %v409
        %v515 = vpack.c.bf16 %v420, %v417
        %v516 = vpack.c.bf16 %v428, %v425
        %v517 = vpack.c.bf16 %v436, %v433
        %v518 = vpack.c.bf16 %v444, %v441
        %v519 = vpack.c.bf16 %v452, %v449
        %v520 = vpack.c.bf16 %v460, %v457
        %v521 = vpack.c.bf16 %v468, %v465
        %v522 = vpack.c.bf16 %v476, %v473
        %v523 = vpack.c.bf16 %v484, %v481
        %v524 = vpack.c.bf16 %v492, %v489
        %v525 = vpack.c.bf16 %v500, %v497
        %v526 = vpack.c.bf16 %v508, %v505
        %v543 = vunpack.c.l.b16 %v511
        %v544 = vunpack.c.h.b16 %v511
        %v545 = vunpack.c.l.b16 %v512
        %v546 = vunpack.c.h.b16 %v512
        %v547 = vunpack.c.l.b16 %v513
        %v548 = vunpack.c.h.b16 %v513
        %v549 = vunpack.c.l.b16 %v514
        %v550 = vunpack.c.h.b16 %v514
        %v551 = vunpack.c.l.b16 %v515
        %v552 = vunpack.c.h.b16 %v515
        %v553 = vunpack.c.l.b16 %v516
        %v554 = vunpack.c.h.b16 %v516
        %v555 = vunpack.c.l.b16 %v517
        %v556 = vunpack.c.h.b16 %v517
        %v557 = vunpack.c.l.b16 %v518
        %v558 = vunpack.c.h.b16 %v518
        %v559 = vunpack.c.l.b16 %v519
        %v560 = vunpack.c.h.b16 %v519
        %v561 = vunpack.c.l.b16 %v520
        %v562 = vunpack.c.h.b16 %v520
        %v563 = vunpack.c.l.b16 %v521
        %v564 = vunpack.c.h.b16 %v521
        %v565 = vunpack.c.l.b16 %v522
        %v566 = vunpack.c.h.b16 %v522
        %v567 = vunpack.c.l.b16 %v523
        %v568 = vunpack.c.h.b16 %v523
        %v569 = vunpack.c.l.b16 %v524
        %v570 = vunpack.c.h.b16 %v524
        %v571 = vunpack.c.l.b16 %v525
        %v572 = vunpack.c.h.b16 %v525
        %v573 = vunpack.c.l.b16 %v526
        %v574 = vunpack.c.h.b16 %v526
        %v575 = vpack.c.b16 %v543, %v543
        %v576 = vpack.c.b16 %v544, %v544
        %v577 = vpack.c.b16 %v545, %v545
        %v578 = vpack.c.b16 %v546, %v546
        %v579 = vpack.c.b16 %v547, %v547
        %v580 = vpack.c.b16 %v548, %v548
        %v581 = vpack.c.b16 %v549, %v549
        %v582 = vpack.c.b16 %v550, %v550
        %v583 = vpack.c.b16 %v551, %v551
        %v584 = vpack.c.b16 %v552, %v552
        %v585 = vpack.c.b16 %v553, %v553
        %v586 = vpack.c.b16 %v554, %v554
        %v587 = vpack.c.b16 %v555, %v555
        %v588 = vpack.c.b16 %v556, %v556
        %v589 = vpack.c.b16 %v557, %v557
        %v590 = vpack.c.b16 %v558, %v558
        %v591 = vpack.c.b16 %v559, %v559
        %v592 = vpack.c.b16 %v560, %v560
        %v593 = vpack.c.b16 %v561, %v561
        %v594 = vpack.c.b16 %v562, %v562
        %v595 = vpack.c.b16 %v563, %v563
        %v596 = vpack.c.b16 %v564, %v564
        %v597 = vpack.c.b16 %v565, %v565
        %v598 = vpack.c.b16 %v566, %v566
        %v599 = vpack.c.b16 %v567, %v567
        %v600 = vpack.c.b16 %v568, %v568
        %v601 = vpack.c.b16 %v569, %v569
        %v602 = vpack.c.b16 %v570, %v570
        %v603 = vpack.c.b16 %v571, %v571
        %v604 = vpack.c.b16 %v572, %v572
        %v605 = vpack.c.b16 %v573, %v573
        %v606 = vpack.c.b16 %v574, %v574
        %639 = vst [vmem:[%s227] sm:$0xf] %v575
        %640 = vst [vmem:[%s227 + $0x4] sm:$0xf] %v576
        %641 = vst [vmem:[%s227 + $0x8] sm:$0xf] %v577
        %642 = vst [vmem:[%s227 + $0xc] sm:$0xf] %v578
        %643 = vst [vmem:[%s227 + $0x10] sm:$0xf] %v579
        %644 = vst [vmem:[%s227 + $0x14] sm:$0xf] %v580
        %645 = vst [vmem:[%s227 + $0x18] sm:$0xf] %v581
        %646 = vst [vmem:[%s227 + $0x1c] sm:$0xf] %v582
        %647 = vst [vmem:[%s227 + $0x20] sm:$0xf] %v583
        %648 = vst [vmem:[%s227 + $0x24] sm:$0xf] %v584
        %649 = vst [vmem:[%s227 + $0x28] sm:$0xf] %v585
        %650 = vst [vmem:[%s227 + $0x2c] sm:$0xf] %v586
        %651 = vst [vmem:[%s227 + $0x30] sm:$0xf] %v587
        %652 = vst [vmem:[%s227 + $0x34] sm:$0xf] %v588
        %653 = vst [vmem:[%s227 + $0x38] sm:$0xf] %v589
        %654 = vst [vmem:[%s227 + $0x3c] sm:$0xf] %v590
        %655 = vst [vmem:[%s227 + $0x40] sm:$0xf] %v591
        %656 = vst [vmem:[%s227 + $0x44] sm:$0xf] %v592
        %657 = vst [vmem:[%s227 + $0x48] sm:$0xf] %v593
        %658 = vst [vmem:[%s227 + $0x4c] sm:$0xf] %v594
        %659 = vst [vmem:[%s227 + $0x50] sm:$0xf] %v595
        %660 = vst [vmem:[%s227 + $0x54] sm:$0xf] %v596
        %661 = vst [vmem:[%s227 + $0x58] sm:$0xf] %v597
        %662 = vst [vmem:[%s227 + $0x5c] sm:$0xf] %v598
        %663 = vst [vmem:[%s227 + $0x60] sm:$0xf] %v599
        %664 = vst [vmem:[%s227 + $0x64] sm:$0xf] %v600
        %665 = vst [vmem:[%s227 + $0x68] sm:$0xf] %v601
        %666 = vst [vmem:[%s227 + $0x6c] sm:$0xf] %v602
        %667 = vst [vmem:[%s227 + $0x70] sm:$0xf] %v603
        %668 = vst [vmem:[%s227 + $0x74] sm:$0xf] %v604
        %669 = vst [vmem:[%s227 + $0x78] sm:$0xf] %v605
        %670 = vst [vmem:[%s227 + $0x7c] sm:$0xf] %v606
        %v671 = vadd.f32 %v385, %v388
        %v672 = vadd.f32 %v671, %v393
        %v673 = vadd.f32 %v672, %v396
        %v674 = vadd.f32 %v673, %v401
        %v675 = vadd.f32 %v674, %v404
        %v676 = vadd.f32 %v675, %v409
        %v677 = vadd.f32 %v676, %v412
        %v678 = vadd.f32 %v677, %v417
        %v679 = vadd.f32 %v678, %v420
        %v680 = vadd.f32 %v679, %v425
        %v681 = vadd.f32 %v680, %v428
        %v682 = vadd.f32 %v681, %v433
        %v683 = vadd.f32 %v682, %v436
        %v684 = vadd.f32 %v683, %v441
        %v685 = vadd.f32 %v684, %v444
        %v686 = vadd.f32 %v685, %v449
        %v687 = vadd.f32 %v686, %v452
        %v688 = vadd.f32 %v687, %v457
        %v689 = vadd.f32 %v688, %v460
        %v690 = vadd.f32 %v689, %v465
        %v691 = vadd.f32 %v690, %v468
        %v692 = vadd.f32 %v691, %v473
        %v693 = vadd.f32 %v692, %v476
        %v694 = vadd.f32 %v693, %v481
        %v695 = vadd.f32 %v694, %v484
        %v696 = vadd.f32 %v695, %v489
        %v697 = vadd.f32 %v696, %v492
        %v698 = vadd.f32 %v697, %v497
        %v699 = vadd.f32 %v698, %v500
        %v700 = vadd.f32 %v699, %v505
        %v701 = vadd.f32 %v700, %v508
        %v702 = vrot.slane %v701, 4
        %v703 = vadd.f32 %v701, %v702
        %v704 = vrot.slane %v703, 2
        %v705 = vadd.f32 %v703, %v704
        %v706 = vrot.slane %v705, 1
        %v707 = vadd.f32 %v705, %v706
        %v708 = vmul.f32 %v385, %v385
        %v709 = vmul.f32 %v388, %v388
        %v710 = vmul.f32 %v393, %v393
        %v711 = vmul.f32 %v396, %v396
        %v712 = vmul.f32 %v401, %v401
        %v713 = vmul.f32 %v404, %v404
        %v714 = vmul.f32 %v409, %v409
        %v715 = vmul.f32 %v412, %v412
        %v716 = vmul.f32 %v417, %v417
        %v717 = vmul.f32 %v420, %v420
        %v718 = vmul.f32 %v425, %v425
        %v719 = vmul.f32 %v428, %v428
        %v720 = vmul.f32 %v433, %v433
        %v721 = vmul.f32 %v436, %v436
        %v722 = vmul.f32 %v441, %v441
        %v723 = vmul.f32 %v444, %v444
        %v724 = vmul.f32 %v449, %v449
        %v725 = vmul.f32 %v452, %v452
        %v726 = vmul.f32 %v457, %v457
        %v727 = vmul.f32 %v460, %v460
        %v728 = vmul.f32 %v465, %v465
        %v729 = vmul.f32 %v468, %v468
        %v730 = vmul.f32 %v473, %v473
        %v731 = vmul.f32 %v476, %v476
        %v732 = vmul.f32 %v481, %v481
        %v733 = vmul.f32 %v484, %v484
        %v734 = vmul.f32 %v489, %v489
        %v735 = vmul.f32 %v492, %v492
        %v736 = vmul.f32 %v497, %v497
        %v737 = vmul.f32 %v500, %v500
        %v738 = vmul.f32 %v505, %v505
        %v739 = vmul.f32 %v508, %v508
        %v740 = vadd.f32 %v708, %v709
        %v741 = vadd.f32 %v740, %v710
        %v742 = vadd.f32 %v741, %v711
        %v743 = vadd.f32 %v742, %v712
        %v744 = vadd.f32 %v743, %v713
        %v745 = vadd.f32 %v744, %v714
        %v746 = vadd.f32 %v745, %v715
        %v747 = vadd.f32 %v746, %v716
        %v748 = vadd.f32 %v747, %v717
        %v749 = vadd.f32 %v748, %v718
        %v750 = vadd.f32 %v749, %v719
        %v751 = vadd.f32 %v750, %v720
        %v752 = vadd.f32 %v751, %v721
        %v753 = vadd.f32 %v752, %v722
        %v754 = vadd.f32 %v753, %v723
        %v755 = vadd.f32 %v754, %v724
        %v756 = vadd.f32 %v755, %v725
        %v757 = vadd.f32 %v756, %v726
        %v758 = vadd.f32 %v757, %v727
        %v759 = vadd.f32 %v758, %v728
        %v760 = vadd.f32 %v759, %v729
        %v761 = vadd.f32 %v760, %v730
        %v762 = vadd.f32 %v761, %v731
        %v763 = vadd.f32 %v762, %v732
        %v764 = vadd.f32 %v763, %v733
        %v765 = vadd.f32 %v764, %v734
        %v766 = vadd.f32 %v765, %v735
        %v767 = vadd.f32 %v766, %v736
        %v768 = vadd.f32 %v767, %v737
        %v769 = vadd.f32 %v768, %v738
        %v770 = vadd.f32 %v769, %v739
        %v771 = vrot.slane %v770, 4
        %v772 = vadd.f32 %v770, %v771
        %v773 = vrot.slane %v772, 2
        %v774 = vadd.f32 %v772, %v773
        %v775 = vrot.slane %v774, 1
        %v776 = vadd.f32 %v774, %v775
        %vm777 = vcmask 1040384
        %v778 = vsel %vm777, %v707, %v776
        %779 = vst [vmem:[%s234] sm:$0x3] %v778
        %s780 = sand.u32 %s96, 1
        %s781 = scalar_lea.sflag [#allocation4], %s780
        %s782 = sand.u32 %s96, 1
        %s783 = smul.addr %s782, 128
        %s784 = scalar_lea.vmem [#allocation7], %s783
        %s785 = sand.u32 %s124, 1
        %s786 = scalar_lea.sflag [#allocation9], %s785
        %s787 = sand.u32 %s124, 1
        %s788 = smul.addr %s787, 2
        %s789 = scalar_lea.vmem [#allocation8], %s788
        // Predicated region
        $region37: #{tpu_custom_call.1} parent=27 // pred_check
          %p790 = pneg %p106
        $region38: #{tpu_custom_call.1} parent=27 // pred_check_branch
          %792 = sbr.rel (%p790) target = $region40
        $region39: #{tpu_custom_call.1} parent=27 // pred_region
          %s793 = smul.u32 32, %s30
          %s795 = ssub.s32 2048, 2048
          %796 = vsyncadd %s781, %s795
          %s797 = smul.addr %s29, 32
          %s798 = sadd.s32 %s793, %s797
          %s799 = smul.addr %s798, 64
          %s800 = scalar_lea.hbm %s2, %s799
          %s801 = sshll.u32 %s784, 4
          %s802 = int_to_ptr.vmem [resolvable:$true] %s801
          %807 = dma.vmem_to_hbm [thread:$0]  %s802, 2048, %s800, %s781, 64, 64, 4
        $region40: #{tpu_custom_call.1} parent=27 // pred_fallthru
          _
        // Predicated region
        $region41: #{tpu_custom_call.1} parent=27 // pred_check
          %p808 = pneg %p134
        $region42: #{tpu_custom_call.1} parent=27 // pred_check_branch
          %810 = sbr.rel (%p808) target = $region44
        $region43: #{tpu_custom_call.1} parent=27 // pred_region
          %s812 = ssub.s32 32, 32
          %813 = vsyncadd %s786, %s812
          %s814 = sadd.s32 %s30, %s29
          %s815 = smul.addr %s814, 32
          %s816 = scalar_lea.hbm %s3, %s815
          %s818 = sshll.u32 %s789, 4
          %s819 = int_to_ptr.vmem [resolvable:$true] %s818
          %821 = dma.vmem_to_hbm [thread:$0]  %s819, 32, %s816, %s786
        $region44: #{tpu_custom_call.1} parent=27 // pred_fallthru
          _
      $region28: #{tpu_custom_call.1} parent=5 // pred_fallthru
        _
      %p822 = scmp.le.s32.totalorder 2, %s20
      // Predicated region
      $region45: #{tpu_custom_call.1} parent=5 // pred_check
        %p823 = pneg %p822
      $region46: #{tpu_custom_call.1} parent=5 // pred_check_branch
        %825 = sbr.rel (%p823) target = $region48
      $region47: #{tpu_custom_call.1} parent=5 // pred_region
        %s826 = ssub.s32 %s20, 2
        // Predicated region
        $region49: #{tpu_custom_call.1} parent=47 // pred_check
          %p827 = pneg %p112
        $region50: #{tpu_custom_call.1} parent=47 // pred_check_branch
          %829 = sbr.rel (%p827) target = $region52
        $region51: #{tpu_custom_call.1} parent=47 // pred_region
          %s830 = sand.u32 %s97, 1
          %s831 = scalar_lea.sflag [#allocation4], %s830
          %s832 = sand.u32 %s97, 1
          %s833 = smul.addr %s832, 128
          %s834 = scalar_lea.vmem [#allocation7], %s833
          %835 = dma.done %s831, 2048
        $region52: #{tpu_custom_call.1} parent=47 // pred_fallthru
          _
        // Predicated region
        $region53: #{tpu_custom_call.1} parent=47 // pred_check
          %p836 = pneg %p140
        $region54: #{tpu_custom_call.1} parent=47 // pred_check_branch
          %838 = sbr.rel (%p836) target = $region56
        $region55: #{tpu_custom_call.1} parent=47 // pred_region
          %s839 = sand.u32 %s125, 1
          %s840 = scalar_lea.sflag [#allocation9], %s839
          %s841 = sand.u32 %s125, 1
          %s842 = smul.addr %s841, 2
          %s843 = scalar_lea.vmem [#allocation8], %s842
          %844 = dma.done %s840, 32
        $region56: #{tpu_custom_call.1} parent=47 // pred_fallthru
          _
      $region48: #{tpu_custom_call.1} parent=5 // pred_fallthru
        _
    $region6: #{tpu_custom_call.1} parent=1 // loop_footer
      %s24 = sadd.s32 1, %s20
    $region7: #{tpu_custom_call.1} parent=1 // loop_footer_branch
      %19 = sbr.rel target = $region3
    $region8: #{tpu_custom_call.1} parent=1 // loop_exit
      _
    %845 = vsyncpa [#allocation3], 1
    %s846 = scalar_lea.sflag [#allocation3], 1
    %847 = vsyncpa %s846, 1
    %848 = vsyncpa [#allocation6], 1
    %849 = vsyncpa [#allocation4], 1
    %s850 = scalar_lea.sflag [#allocation4], 1
    %851 = vsyncpa %s850, 1
    %852 = vsyncpa [#allocation9], 1
    %s853 = scalar_lea.sflag [#allocation9], 1
    %854 = vsyncpa %s853, 1

</llo_original>
